<compile_context>
chip_gen: v7x
topology: tpu7x:2x2x1
jax: 0.10.0
libtpu: 0.0.40
codegen_flags: <defaults>
</compile_context>

<pallas_src>
import functools

import jax
import jax.numpy as jnp
from jax.experimental import pallas as pl
from jax.experimental.pallas import tpu as pltpu


# ----------------------------------------------------------------------------
# Helpers
# ----------------------------------------------------------------------------
def _vmem_capacity_bytes():
    """Physical VMEM per core, with a conservative (v7x) fallback."""
    try:
        info = pltpu.get_tpu_info()
        for attr in ("vmem_capacity_bytes", "vmem_size_bytes", "vmem_bytes"):
            v = getattr(info, attr, None)
            if isinstance(v, int) and v > 0:
                return v
    except Exception:
        pass
    return 64 << 20  # v7x per-TC physical VMEM


def _sublane_multiple(itemsize):
    if itemsize >= 4:
        return 8
    if itemsize == 2:
        return 16
    return 32


def _choose_block_rows(n_rows, row_bytes, sublane):
    """Largest row tile targeting ~4 MiB of x per block (dtype-aware)."""
    target = 4 << 20
    tn = (target // max(1, row_bytes)) // sublane * sublane
    tn = max(sublane, tn)
    return n_rows if tn >= n_rows else tn


# ----------------------------------------------------------------------------
# Fused single-pass kernel (whole array resident in VMEM)
# ----------------------------------------------------------------------------
def _fused_kernel(x_ref, o_ref, *, n_rows, scale):
    x = x_ref[...].astype(jnp.float32)                       # [N, D]
    nf = jnp.float32(n_rows)
    mean = jnp.sum(x, axis=0, keepdims=True) / nf            # [1, D]
    xc = x - mean
    msq = jnp.sum(jnp.sum(xc * xc, axis=0, keepdims=True)) / nf
    inv = jnp.float32(scale) * jax.lax.rsqrt(jnp.float32(1e-6) + msq)
    o_ref[...] = (xc * inv).astype(o_ref.dtype)


# ----------------------------------------------------------------------------
# Two-pass streaming kernels
# ----------------------------------------------------------------------------
def _stats_kernel(x_ref, colsum_ref, sqsum_ref, *, n_rows, block_rows,
                  tiles_per_core, full_tiles, needs_mask):
    """Accumulate per-column sums and per-column sum-of-squares (f32)."""
    c = pl.program_id(0)   # core split ("parallel")
    i = pl.program_id(1)   # row-tile loop ("arbitrary")

    @pl.when(i == 0)
    def _init():
        colsum_ref[...] = jnp.zeros_like(colsum_ref)
        sqsum_ref[...] = jnp.zeros_like(sqsum_ref)

    def _accum(xv):
        colsum_ref[...] += jnp.sum(xv, axis=0, keepdims=True)[jnp.newaxis]
        sqsum_ref[...] += jnp.sum(xv * xv, axis=0, keepdims=True)[jnp.newaxis]

    if needs_mask:
        t = c * tiles_per_core + i   # global tile index

        @pl.when(t < full_tiles)
        def _interior():
            _accum(x_ref[...].astype(jnp.float32))

        @pl.when(t >= full_tiles)
        def _boundary():
            xv = x_ref[...].astype(jnp.float32)
            row = t * block_rows + jax.lax.broadcasted_iota(
                jnp.int32, (block_rows, 1), 0)
            _accum(jnp.where(row < n_rows, xv, 0.0))
    else:
        _accum(x_ref[...].astype(jnp.float32))


def _normalize_kernel(mean_ref, inv_ref, x_ref, o_ref):
    """out = (x - col_mean) * (scale / rownorm_mean), per row tile."""
    x = x_ref[...].astype(jnp.float32)                       # [TN, Dp]
    o_ref[...] = ((x - mean_ref[...]) * inv_ref[0]).astype(o_ref.dtype)


def _pairnorm_two_pass(x, scale, safe_cap, block_rows):
    n, d = x.shape

    # Lane-dense packing for small feature dims (d | 128 => d, k powers of 2).
    k = (128 // d) if (d < 128 and 128 % d == 0) else 1
    pad = (-n) % k
    xp = jnp.pad(x, ((0, pad), (0, 0))) if pad else x        # zero rows: no effect on stats
    n_pad = n + pad
    n_p, d_p = n_pad // k, d * k
    xp = xp.reshape(n_p, d_p)                                # free (contiguous)

    itemsize = jnp.dtype(x.dtype).itemsize
    sublane = _sublane_multiple(itemsize)
    if block_rows is None:
        tn = _choose_block_rows(n_p, d_p * itemsize, sublane)
    else:
        tn = min(n_p, max(sublane, (block_rows // sublane) * sublane))

    grid_n = pl.cdiv(n_p, tn)
    full_tiles = n_p // tn
    half = pl.cdiv(grid_n, 2)                # tiles per core
    needs_mask = (2 * half != full_tiles)
    vmem_limit = int(min(safe_cap, 48 << 20))

    # Clamp so redundant/boundary tiles still map to a valid block (masked away).
    x_map = lambda c, i: (jnp.minimum(c * half + i, grid_n - 1), 0)

    # ---- Pass 1: per-column col-sum / sum-of-squares, 2-way core split. ----
    colsum3, sqsum3 = pl.pallas_call(
        functools.partial(_stats_kernel, n_rows=n_p, block_rows=tn,
                          tiles_per_core=half, full_tiles=full_tiles,
                          needs_mask=needs_mask),
        out_shape=(jax.ShapeDtypeStruct((2, 1, d_p), jnp.float32),
                   jax.ShapeDtypeStruct((2, 1, d_p), jnp.float32)),
        grid=(2, half),
        in_specs=[pl.BlockSpec((tn, d_p), x_map)],
        out_specs=(pl.BlockSpec((1, 1, d_p), lambda c, i: (c, 0, 0)),
                   pl.BlockSpec((1, 1, d_p), lambda c, i: (c, 0, 0))),
        compiler_params=pltpu.CompilerParams(
            dimension_semantics=("parallel", "arbitrary"),
            vmem_limit_bytes=vmem_limit),
    )(xp)

    # ---- Tiny scalar / [D] glue (negligible vs the HBM-bound passes). ----
    nf = jnp.float32(n)
    col_sum_p = jnp.sum(colsum3, axis=(0, 1))                # [Dp]
    sq_total = jnp.sum(sqsum3)                               # scalar
    col_sum = col_sum_p.reshape(k, d).sum(axis=0) if k > 1 else col_sum_p
    col_mean = col_sum / nf                                  # [D]
    # sum_i ||x_i - mu||^2 = sum||x||^2 - ||col_sum||^2 / N  (clamped >= 0)
    centered = jnp.maximum(sq_total - jnp.sum(col_sum * col_sum) / nf, 0.0)
    rownorm = jnp.sqrt(jnp.float32(1e-6) + centered / nf)
    inv_s = (jnp.float32(scale) / rownorm).reshape(1)        # scale folded in
    mean_p = jnp.tile(col_mean.reshape(1, d), (1, k))        # [1, Dp] f32

    # ---- Pass 2: normalize independent row tiles. ----
    out_p = pl.pallas_call(
        _normalize_kernel,
        out_shape=jax.ShapeDtypeStruct((n_p, d_p), x.dtype),
        grid=(grid_n,),
        in_specs=[
            pl.BlockSpec((1, d_p), lambda i: (0, 0)),                   # mean (VMEM)
            pl.BlockSpec(memory_space=pltpu.MemorySpace.SMEM),          # inv scalar
            pl.BlockSpec((tn, d_p), lambda i: (i, 0)),                  # x tile
        ],
        out_specs=pl.BlockSpec((tn, d_p), lambda i: (i, 0)),
        compiler_params=pltpu.CompilerParams(
            dimension_semantics=("parallel",),
            vmem_limit_bytes=vmem_limit),
    )(mean_p, inv_s, xp)

    out = out_p.reshape(n_pad, d)
    if pad:
        out = out[:n]
    return out


# ----------------------------------------------------------------------------
# Public entry point
# ----------------------------------------------------------------------------
def pairnorm(x, mode: str = "PN", scale: float = 1.0, *,
             force_two_pass: bool = False, block_rows=None):
    assert mode in ("None", "PN")
    if mode == "None":
        return x

    n, d = x.shape
    cap = _vmem_capacity_bytes()
    safe_cap = max(32 << 20, cap - (16 << 20))               # headroom below physical

    # Fused single-pass path: ~6x f32 working-set estimate must fit in VMEM.
    fused_need = 6 * (n * d * 4) + (4 << 20)
    if (not force_two_pass) and fused_need <= min(safe_cap, 64 << 20):
        return pl.pallas_call(
            functools.partial(_fused_kernel, n_rows=n, scale=float(scale)),
            out_shape=jax.ShapeDtypeStruct((n, d), x.dtype),
            compiler_params=pltpu.CompilerParams(
                vmem_limit_bytes=int(min(safe_cap, 64 << 20))),
        )(x)

    return _pairnorm_two_pass(x, float(scale), safe_cap, block_rows)


# ----------------------------------------------------------------------------
# Reference + demo
# ----------------------------------------------------------------------------
def _pairnorm_ref(x, scale=1.0):
    col_mean = x.mean(axis=0)
    xc = x - col_mean
    rownorm_mean = jnp.sqrt(1e-6 + (xc ** 2).sum(axis=1).mean())
    return scale * xc / rownorm_mean


if __name__ == "__main__":
    key = jax.random.PRNGKey(0)
    k1, k2, k3 = jax.random.split(key, 3)

    # Case 1 (primary, small): fused single-pass VMEM-resident kernel.
    x1 = jax.random.normal(k1, (8, 32), dtype=jnp.float32)   # nodes x features
    out1 = jax.block_until_ready(pairnorm(x1, mode="PN", scale=1.0))
    ref1 = _pairnorm_ref(x1)
    assert out1.shape == x1.shape and out1.dtype == x1.dtype
    assert float(jnp.max(jnp.abs(out1 - ref1))) < 1e-4

    # Case 2: streaming two-pass path, lane-dense packing with row padding.
    x2 = jax.random.normal(k2, (1030, 32), dtype=jnp.float32)
    out2 = jax.block_until_ready(
        pairnorm(x2, mode="PN", scale=1.0, force_two_pass=True, block_rows=64))
    ref2 = _pairnorm_ref(x2)
    assert out2.shape == x2.shape and out2.dtype == x2.dtype
    assert float(jnp.max(jnp.abs(out2 - ref2))) < 5e-4

    # Case 3: streaming two-pass path, unpacked feature dim (200 does not divide 128).
    x3 = jax.random.normal(k3, (600, 200), dtype=jnp.float32)
    out3 = jax.block_until_ready(
        pairnorm(x3, mode="PN", scale=1.0, force_two_pass=True, block_rows=128))
    ref3 = _pairnorm_ref(x3)
    assert out3.shape == x3.shape and out3.dtype == x3.dtype
    assert float(jnp.max(jnp.abs(out3 - ref3))) < 5e-4

    print("KERNEL_OK")
</pallas_src>

<mosaic_0001>
module attributes {stable_mosaic.version = 11 : i64} {
  func.func @_fused_kernel(%arg0: memref<8x32xf32, #tpu.memory_space<vmem>>, %arg1: memref<8x32xf32, #tpu.memory_space<vmem>>) attributes {dimension_semantics = [], scalar_prefetch = 0 : i64, scratch_operands = 0 : i64, tpu.core_type = #tpu.core_type<tc>} {
    %c0 = arith.constant 0 : index
    %c0_0 = arith.constant 0 : index
    %0 = vector.load %arg0[%c0, %c0_0] : memref<8x32xf32, #tpu.memory_space<vmem>>, vector<8x32xf32>
    %cst = arith.constant dense<0.000000e+00> : vector<32xf32>
    %1 = vector.multi_reduction <add>, %0, %cst [0] : vector<8x32xf32> to vector<32xf32>
    %2 = vector.shape_cast %1 : vector<32xf32> to vector<1x32xf32>
    %cst_1 = arith.constant 8.000000e+00 : f32
    %3 = vector.broadcast %cst_1 : f32 to vector<1x32xf32>
    %4 = arith.divf %2, %3 : vector<1x32xf32>
    %5 = vector.broadcast %4 : vector<1x32xf32> to vector<8x32xf32>
    %6 = arith.subf %0, %5 : vector<8x32xf32>
    %7 = arith.mulf %6, %6 : vector<8x32xf32>
    %cst_2 = arith.constant dense<0.000000e+00> : vector<32xf32>
    %8 = vector.multi_reduction <add>, %7, %cst_2 [0] : vector<8x32xf32> to vector<32xf32>
    %9 = vector.shape_cast %8 : vector<32xf32> to vector<1x32xf32>
    %10 = vector.shape_cast %9 : vector<1x32xf32> to vector<1x1x32xf32>
    %cst_3 = arith.constant dense<0.000000e+00> : vector<1xf32>
    %11 = vector.multi_reduction <add>, %10, %cst_3 [1, 2] : vector<1x1x32xf32> to vector<1xf32>
    %12 = vector.shape_cast %11 : vector<1xf32> to vector<1x1x1xf32>
    %13 = vector.extract %12[0, 0, 0] : f32 from vector<1x1x1xf32>
    %cst_4 = arith.constant 8.000000e+00 : f32
    %14 = arith.divf %13, %cst_4 : f32
    %cst_5 = arith.constant 9.99999997E-7 : f32
    %15 = arith.addf %cst_5, %14 : f32
    %16 = math.rsqrt %15 : f32
    %cst_6 = arith.constant 1.000000e+00 : f32
    %17 = arith.mulf %cst_6, %16 : f32
    %18 = vector.broadcast %17 : f32 to vector<8x32xf32>
    %19 = arith.mulf %6, %18 : vector<8x32xf32>
    %c0_7 = arith.constant 0 : index
    %c0_8 = arith.constant 0 : index
    %20 = vector.load %arg1[%c0_7, %c0_8] : memref<8x32xf32, #tpu.memory_space<vmem>>, vector<8x32xf32>
    tpu.vector_store %arg1[%c0_7, %c0_8], %19 {strides = array<i32>} : memref<8x32xf32, #tpu.memory_space<vmem>>, vector<8x32xf32>,
    return
  }
}

</mosaic_0001>

<llo_original>
// kernel: tpu_custom_call.1
$region0: #{tpu_custom_call.1}
  #allocation0 [shape = 'u32[]', space=smem, size = 0x4, offset = 0x4, fixed_abs, tag = 'smem constant byte address 0x4 - core index']
  #allocation1 [shape = 'u32[144,128]{1,0:T(1,128)}', space=vmem, size = 0x12000, scoped, tag = 'internal scratch']
  %s0 = inlined_call_operand.hbm [shape: f32[8,32], index: 0, kind: input, shape index: {}]
  %s1 = inlined_call_operand.hbm [shape: f32[8,32], index: 1, kind: output, shape index: {}]
  %s2 = sld [smem:[#allocation0]]
  $region18: #{tpu_custom_call.1} parent=0
    _
  %s4 = ssub.s32 1, %s2
  %s5 = scalar_select 0, %s4, %s2
  $region1: #{tpu_custom_call.1} parent=0
    #allocation2 [shape = 'u8[4096]{0}', space=vmem, size = 0x1000, scoped, tag = 'input window, operand 0, single buffered']
    #allocation3 [shape = 's32[1]{0}', space=sflag, size = 0x4, scoped, tag = 'scoped memory for tpu_custom_call.1']
    #allocation4 [shape = 's32[1]{0}', space=sflag, size = 0x4, scoped, tag = 'scoped memory for tpu_custom_call.1']
    #allocation5 [shape = 'u8[4096]{0}', space=vmem, size = 0x1000, scoped, tag = 'output window, operand 0, single buffered']
    %6 = vsyncpa [#allocation3], 0
    %7 = vsyncpa [#allocation4], 0
    // Predicated region
    $region2: #{tpu_custom_call.1} parent=1 // pred_check
      _
    $region3: #{tpu_custom_call.1} parent=1 // pred_check_branch
      %9 = sbr.rel (0) target = $region5
    $region4: #{tpu_custom_call.1} parent=1 // pred_region
      %s11 = ssub.s32 128, 128
      %12 = vsyncadd [#allocation3], %s11
      %s14 = sshll.u32 [#allocation2], 4
      %s15 = int_to_ptr.vmem [resolvable:$true] %s14
      %17 = dma.hbm_to_vmem [thread:$0]  %s0, 128, %s15, [#allocation3]
    $region5: #{tpu_custom_call.1} parent=1 // pred_fallthru
      _
    // Predicated region
    $region6: #{tpu_custom_call.1} parent=1 // pred_check
      _
    $region7: #{tpu_custom_call.1} parent=1 // pred_check_branch
      %19 = sbr.rel (0) target = $region9
    $region8: #{tpu_custom_call.1} parent=1 // pred_region
      %20 = dma.done [#allocation3], 128
    $region9: #{tpu_custom_call.1} parent=1 // pred_fallthru
      _
    %v21 = vld [vmem:[#allocation2] sm:$0xff]
    %vm22 = vcmask 261120
    %v23 = vsel %vm22, %v21, 0.0
    %v24 = vrot.slane %v23, 4
    %v25 = vadd.f32 %v23, %v24
    %v26 = vrot.slane %v25, 2
    %v27 = vadd.f32 %v25, %v26
    %v28 = vrot.slane %v27, 1
    %v29 = vadd.f32 %v27, %v28
    %v30 = vrcp.pop 8.0
    %v31 = vmul.f32 %v29, %v30
    %v32 = vsub.f32 %v21, %v31
    %v33 = vmul.f32 %v32, %v32
    %v34 = vsel %vm22, %v33, 0.0
    %v35 = vrot.slane %v34, 4
    %v36 = vadd.f32 %v34, %v35
    %v37 = vrot.slane %v36, 2
    %v38 = vadd.f32 %v36, %v37
    %v39 = vrot.slane %v38, 1
    %v40 = vadd.f32 %v38, %v39
    %vm41 = vcmask 253952
    %v42 = vsel %vm41, %v40, 0.0
    %43 = vadd.xlane.f32.xlu0 %v42
    %v44 = vpop.xlane.xlu0 %43
    %v45 = vrot.slane %v44, 4
    %v46 = vadd.f32 %v44, %v45
    %v47 = vrot.slane %v46, 2
    %v48 = vadd.f32 %v46, %v47
    %v49 = vrot.slane %v48, 1
    %v50 = vadd.f32 %v48, %v49
    %s51 = vtos %v50
    %v52 = vrcp.pop 8.0
    %s53 = vtos %v52
    %s54 = smul.f32 %s51, %s53
    %s55 = sadd.f32 %s54, 1e-06
    %v56 = vstv %s55
    %v57 = vrsqrt.pop %v56
    %s58 = vtos %v57
    %v59 = vstv %s58
    %v60 = vmul.f32 %v32, %v59
    %61 = vst.msk [vmem:[#allocation5] sm:$0xff] %vm22, %v60
    // Predicated region
    $region10: #{tpu_custom_call.1} parent=1 // pred_check
      _
    $region11: #{tpu_custom_call.1} parent=1 // pred_check_branch
      %63 = sbr.rel (0) target = $region13
    $region12: #{tpu_custom_call.1} parent=1 // pred_region
      %s65 = ssub.s32 128, 128
      %66 = vsyncadd [#allocation4], %s65
      %s68 = sshll.u32 [#allocation5], 4
      %s69 = int_to_ptr.vmem [resolvable:$true] %s68
      %71 = dma.vmem_to_hbm [thread:$0]  %s69, 128, %s1, [#allocation4]
    $region13: #{tpu_custom_call.1} parent=1 // pred_fallthru
      _
    // Predicated region
    $region14: #{tpu_custom_call.1} parent=1 // pred_check
      _
    $region15: #{tpu_custom_call.1} parent=1 // pred_check_branch
      %73 = sbr.rel (0) target = $region17
    $region16: #{tpu_custom_call.1} parent=1 // pred_region
      %74 = dma.done [#allocation4], 128
    $region17: #{tpu_custom_call.1} parent=1 // pred_fallthru
      _
    %75 = vsyncpa [#allocation3], 1
    %76 = vsyncpa [#allocation4], 1

</llo_original>
